<compile_context>
chip_gen: v5e
topology: v5e:2x2
jax: 0.10.0
libtpu: 0.0.40
codegen_flags: <defaults>
</compile_context>

<pallas_src>
import functools

import jax
import jax.numpy as jnp
from jax.experimental import pallas as pl
from jax.experimental.pallas import tpu as pltpu

F32 = jnp.float32
BF16 = jnp.bfloat16


def hypergraph_kernel(node_ref, gather_ref, scatter_ref, pos_ref, relv_ref,
                      w_agg_ref, w_node_ref, bias_ref, gamma_ref, beta_ref,
                      out_ref, msg_ref, *, arity: int):
    _, N, D = node_ref.shape
    AE = pos_ref.shape[0]
    E = AE // arity

    x = node_ref[0]                                          # (N, D) f32
    x_bf = x.astype(BF16)

    # Fused gather: one stacked one-hot matmul (A*E, N) @ (N, D) on the MXU.
    # Column 0 of the one-hot is pre-zeroed (node_features[:, 0, :] = 0 for the
    # gather side); positional encodings were hoisted to the wrapper.
    y = jnp.dot(gather_ref[...], x_bf, preferred_element_type=F32)
    y = y + pos_ref[...]                                     # (A*E, D) f32

    # All-but-one product over the arity axis (static unroll, f32 VPU work),
    # times the per-edge relation vector.  Messages land in a contiguous VMEM
    # slab so the scatter below is a single matmul.
    relv = relv_ref[...]                                     # (E, D) f32
    ones = jnp.ones((E, D), F32)
    fwd = [ones]
    for a in range(1, arity):
        fwd.append(fwd[-1] * y[(a - 1) * E:a * E, :])
    bwd = [ones] * arity
    for a in range(arity - 2, -1, -1):
        bwd[a] = bwd[a + 1] * y[(a + 1) * E:(a + 2) * E, :]
    for a in range(arity):
        msg_ref[a * E:(a + 1) * E, :] = fwd[a] * bwd[a] * relv

    # Fused scatter-add: one (N, A*E) @ (A*E, D) matmul; the contraction over
    # A*E accumulates inside the MXU.  Row 0 of the one-hot is zero, so
    # agg[0, :] == 0 without a post-mask.
    agg = jnp.dot(scatter_ref[...], msg_ref[...].astype(BF16),
                  preferred_element_type=F32)                # (N, D) f32

    # linear(cat([agg, x], -1)) == agg @ W[:D] + x @ W[D:] + bias, with the
    # node-0 features zeroed (the reference mutates node_features in place).
    row_ids = jax.lax.broadcasted_iota(jnp.int32, (N, D), 0)
    x_lin = jnp.where(row_ids == 0, 0.0, x).astype(BF16)
    h = (jnp.dot(agg.astype(BF16), w_agg_ref[...], preferred_element_type=F32)
         + jnp.dot(x_lin, w_node_ref[...], preferred_element_type=F32)
         + bias_ref[...])                                    # (N, O) f32

    # Dropout: identity in eval mode.
    # LayerNorm over the last dim (eps = 1e-5, nn.LayerNorm defaults).
    mean = jnp.mean(h, axis=-1, keepdims=True)
    var = jnp.mean((h - mean) ** 2, axis=-1, keepdims=True)
    hn = (h - mean) * jax.lax.rsqrt(var + 1e-5)
    out_ref[0] = hn * gamma_ref[...] + beta_ref[...]


def hypergraph_layer(node_features, edge_list, rel, pos_emb, rel_emb, w, bias,
                     gamma=None, beta=None):
    """HypergraphLayer forward (sum aggr, layer_norm, dependent=False, eval)."""
    B, N, D = node_features.shape
    E, A = edge_list.shape
    O = w.shape[1]

    # ---- batch-invariant precompute (hoisted out of the kernel grid) --------
    edge_list = edge_list.astype(jnp.int32)
    flat_idx = edge_list.T.reshape(A * E)                 # slot-major: k = a*E+e
    node_ids = jnp.arange(N, dtype=jnp.int32)
    gather_oh = (flat_idx[:, None] == node_ids[None, :]).astype(F32)  # (A*E, N)
    gather_oh = gather_oh.at[:, 0].set(0.0)   # node-0 features zeroed for gather
    scatter_oh = gather_oh.T                  # (N, A*E); row 0 zero -> agg[0]=0

    seq = jnp.arange(1, A + 1, dtype=jnp.int32)
    pos_idx = jnp.where(edge_list != 0, seq[None, :], 0)      # (E, A)
    pos_ae = pos_emb[pos_idx.T.reshape(A * E)].astype(F32)    # (A*E, D)
    relv = rel_emb[rel].astype(F32)                           # (E, D)

    gather_bf = gather_oh.astype(BF16)
    scatter_bf = scatter_oh.astype(BF16)
    w_agg = w[:D].astype(BF16)
    w_node = w[D:].astype(BF16)
    bias2 = bias.reshape(1, O).astype(F32)
    gamma2 = (jnp.ones((1, O), F32) if gamma is None
              else gamma.reshape(1, O).astype(F32))
    beta2 = (jnp.zeros((1, O), F32) if beta is None
             else beta.reshape(1, O).astype(F32))

    const = lambda *_: (0, 0)
    grid_spec = pltpu.PrefetchScalarGridSpec(
        num_scalar_prefetch=0,
        grid=(B,),   # one batch per step; B=2 keeps both v7x TensorCores busy
        in_specs=[
            pl.BlockSpec((1, N, D), lambda b: (b, 0, 0)),   # node features
            pl.BlockSpec((A * E, N), const),                # stacked gather one-hot
            pl.BlockSpec((N, A * E), const),                # stacked scatter one-hot
            pl.BlockSpec((A * E, D), const),                # per-slot positional enc
            pl.BlockSpec((E, D), const),                    # rel_emb[rel]
            pl.BlockSpec((D, O), const),                    # W[:D]
            pl.BlockSpec((D, O), const),                    # W[D:]
            pl.BlockSpec((1, O), const),                    # bias
            pl.BlockSpec((1, O), const),                    # ln gamma
            pl.BlockSpec((1, O), const),                    # ln beta
        ],
        out_specs=pl.BlockSpec((1, N, O), lambda b: (b, 0, 0)),
        scratch_shapes=[pltpu.VMEM((A * E, D), F32)],       # message slab
    )
    return pl.pallas_call(
        functools.partial(hypergraph_kernel, arity=A),
        out_shape=jax.ShapeDtypeStruct((B, N, O), F32),
        grid_spec=grid_spec,
        compiler_params=pltpu.CompilerParams(
            dimension_semantics=("parallel",),
            vmem_limit_bytes=32 * 1024 * 1024),
    )(node_features.astype(F32), gather_bf, scatter_bf, pos_ae, relv,
      w_agg, w_node, bias2, gamma2, beta2)


def reference_forward(node_features, edge_list, rel, pos_emb, rel_emb, w, bias):
    # Pure-JAX re-implementation of the PyTorch (use_triton=False) path,
    # eval mode (dropout=identity), LayerNorm gamma=1 / beta=0.
    B, N, D = node_features.shape
    E, A = edge_list.shape
    x = node_features.at[:, 0, :].set(0.0)
    gathered = x[:, edge_list]                                # (B, E, A, D)
    seq = jnp.arange(1, A + 1, dtype=edge_list.dtype)
    pos_idx = jnp.where(edge_list != 0, seq[None, :], 0)      # (E, A)
    y = gathered + pos_emb[pos_idx][None]                     # (B, E, A, D)
    cf = jnp.cumprod(y, axis=2)
    cb = jnp.flip(jnp.cumprod(jnp.flip(y, axis=2), axis=2), axis=2)
    sf = jnp.concatenate([jnp.ones((B, E, 1, D)), cf[:, :, :-1]], axis=2)
    sb = jnp.concatenate([cb[:, :, 1:], jnp.ones((B, E, 1, D))], axis=2)
    msg = sf * sb * rel_emb[rel][None, :, None, :]
    agg = jnp.zeros((B, N, D)).at[:, edge_list.reshape(-1)].add(
        msg.reshape(B, E * A, D))
    agg = agg.at[:, 0, :].set(0.0)
    h = jnp.concatenate([agg, x], axis=-1) @ w + bias
    mean = h.mean(-1, keepdims=True)
    var = ((h - mean) ** 2).mean(-1, keepdims=True)
    return (h - mean) / jnp.sqrt(var + 1e-5)


if __name__ == "__main__":
    # Hyperparameters implied by __init__: in_channels=32, out_channels=32,
    # num_relation=8, max_arity=6, dependent=False, norm='layer_norm'.
    B, N, D, O = 2, 16, 32, 32
    E, A, R = 8, 6, 8

    key = jax.random.PRNGKey(0)
    kx, kq, ke, kr, kw, kp, krel = jax.random.split(key, 7)

    node_features = jax.random.normal(kx, (B, N, D), F32)
    query = jax.random.normal(kq, (B, D), F32)   # unused: dependent=False
    edge_list = jax.random.randint(ke, (E, A), 0, N).astype(jnp.int32)
    rel = jax.random.randint(kr, (E,), 0, R).astype(jnp.int32)

    # Deterministic parameter init
    w = jax.random.normal(kw, (2 * D, O), F32) * 0.1          # Linear(2D -> O)
    bias = jnp.zeros((O,), F32)
    pos_emb = jax.random.normal(kp, (A + 1, D), F32) * 0.5
    pos_emb = pos_emb.at[0].set(1.0)       # forward: pos_embedding.weight[0] = 1
    rel_emb = jax.random.normal(krel, (R, D), F32) * 0.5

    out = hypergraph_layer(node_features, edge_list, rel, pos_emb, rel_emb, w, bias)
    out = jax.block_until_ready(out)

    ref = reference_forward(node_features, edge_list, rel, pos_emb, rel_emb, w, bias)
    assert out.shape == (B, N, O)
    assert jnp.allclose(out, ref, rtol=5e-2, atol=5e-2), float(
        jnp.max(jnp.abs(out - ref)))

    # TODO(synk): training-mode dropout (random mask + 1/(1-p) scaling) and the
    # dependent=True relation_linear path are not implemented (eval-mode,
    # dependent=False semantics only).
    print("KERNEL_OK")
</pallas_src>

<mosaic_0001>
module attributes {stable_mosaic.version = 11 : i64} {
  func.func @hypergraph_kernel(%arg0: i32, %arg1: memref<1x16x32xf32, #tpu.memory_space<vmem>>, %arg2: memref<48x16xbf16, #tpu.memory_space<vmem>>, %arg3: memref<16x48xbf16, #tpu.memory_space<vmem>>, %arg4: memref<48x32xf32, #tpu.memory_space<vmem>>, %arg5: memref<8x32xf32, #tpu.memory_space<vmem>>, %arg6: memref<32x32xbf16, #tpu.memory_space<vmem>>, %arg7: memref<32x32xbf16, #tpu.memory_space<vmem>>, %arg8: memref<1x32xf32, #tpu.memory_space<vmem>>, %arg9: memref<1x32xf32, #tpu.memory_space<vmem>>, %arg10: memref<1x32xf32, #tpu.memory_space<vmem>>, %arg11: memref<1x16x32xf32, #tpu.memory_space<vmem>>, %arg12: memref<48x32xf32, #tpu.memory_space<vmem>>) attributes {dimension_semantics = [#tpu.dimension_semantics<parallel>], iteration_bounds = array<i64: 2>, scalar_prefetch = 0 : i64, scratch_operands = 1 : i64, tpu.core_type = #tpu.core_type<tc>, window_params = [{transform_indices = @transform_0, window_bounds = array<i64: 1, 16, 32>}, {pipeline_mode = #tpu.pipeline_mode<synchronous>, transform_indices = @transform_1, window_bounds = array<i64: 48, 16>}, {pipeline_mode = #tpu.pipeline_mode<synchronous>, transform_indices = @transform_2, window_bounds = array<i64: 16, 48>}, {pipeline_mode = #tpu.pipeline_mode<synchronous>, transform_indices = @transform_3, window_bounds = array<i64: 48, 32>}, {pipeline_mode = #tpu.pipeline_mode<synchronous>, transform_indices = @transform_4, window_bounds = array<i64: 8, 32>}, {pipeline_mode = #tpu.pipeline_mode<synchronous>, transform_indices = @transform_5, window_bounds = array<i64: 32, 32>}, {pipeline_mode = #tpu.pipeline_mode<synchronous>, transform_indices = @transform_6, window_bounds = array<i64: 32, 32>}, {pipeline_mode = #tpu.pipeline_mode<synchronous>, transform_indices = @transform_7, window_bounds = array<i64: 1, 32>}, {pipeline_mode = #tpu.pipeline_mode<synchronous>, transform_indices = @transform_8, window_bounds = array<i64: 1, 32>}, {pipeline_mode = #tpu.pipeline_mode<synchronous>, transform_indices = @transform_9, window_bounds = array<i64: 1, 32>}, {transform_indices = @transform_10, window_bounds = array<i64: 1, 16, 32>}]} {
    %c0 = arith.constant 0 : index
    %c0_0 = arith.constant 0 : index
    %c0_1 = arith.constant 0 : index
    %0 = vector.load %arg1[%c0, %c0_0, %c0_1] : memref<1x16x32xf32, #tpu.memory_space<vmem>>, vector<1x16x32xf32>
    %1 = vector.shape_cast %0 : vector<1x16x32xf32> to vector<16x32xf32>
    %2 = arith.truncf %1 : vector<16x32xf32> to vector<16x32xbf16>
    %c0_2 = arith.constant 0 : index
    %c0_3 = arith.constant 0 : index
    %3 = vector.load %arg2[%c0_2, %c0_3] : memref<48x16xbf16, #tpu.memory_space<vmem>>, vector<48x16xbf16>
    %cst = arith.constant dense<0.000000e+00> : vector<48x32xf32>
    %4 = tpu.matmul %3, %2, %cst {dimension_numbers = #tpu.dot_dimension_numbers<[1], [0], [0], [1], [0, 0, 1, 1], [], []>} : vector<48x16xbf16>, vector<16x32xbf16>, vector<48x32xf32> -> vector<48x32xf32>
    %c0_4 = arith.constant 0 : index
    %c0_5 = arith.constant 0 : index
    %5 = vector.load %arg4[%c0_4, %c0_5] : memref<48x32xf32, #tpu.memory_space<vmem>>, vector<48x32xf32>
    %6 = arith.addf %4, %5 : vector<48x32xf32>
    %c0_6 = arith.constant 0 : index
    %c0_7 = arith.constant 0 : index
    %7 = vector.load %arg5[%c0_6, %c0_7] : memref<8x32xf32, #tpu.memory_space<vmem>>, vector<8x32xf32>
    %cst_8 = arith.constant 1.000000e+00 : f32
    %8 = vector.broadcast %cst_8 : f32 to vector<8x32xf32>
    %9 = vector.extract_strided_slice %6 {offsets = [0, 0], sizes = [8, 32], strides = [1, 1]} : vector<48x32xf32> to vector<8x32xf32>
    %10 = arith.mulf %8, %9 : vector<8x32xf32>
    %11 = vector.extract_strided_slice %6 {offsets = [8, 0], sizes = [8, 32], strides = [1, 1]} : vector<48x32xf32> to vector<8x32xf32>
    %12 = arith.mulf %10, %11 : vector<8x32xf32>
    %13 = vector.extract_strided_slice %6 {offsets = [16, 0], sizes = [8, 32], strides = [1, 1]} : vector<48x32xf32> to vector<8x32xf32>
    %14 = arith.mulf %12, %13 : vector<8x32xf32>
    %15 = vector.extract_strided_slice %6 {offsets = [24, 0], sizes = [8, 32], strides = [1, 1]} : vector<48x32xf32> to vector<8x32xf32>
    %16 = arith.mulf %14, %15 : vector<8x32xf32>
    %17 = vector.extract_strided_slice %6 {offsets = [32, 0], sizes = [8, 32], strides = [1, 1]} : vector<48x32xf32> to vector<8x32xf32>
    %18 = arith.mulf %16, %17 : vector<8x32xf32>
    %19 = vector.extract_strided_slice %6 {offsets = [40, 0], sizes = [8, 32], strides = [1, 1]} : vector<48x32xf32> to vector<8x32xf32>
    %20 = arith.mulf %8, %19 : vector<8x32xf32>
    %21 = vector.extract_strided_slice %6 {offsets = [32, 0], sizes = [8, 32], strides = [1, 1]} : vector<48x32xf32> to vector<8x32xf32>
    %22 = arith.mulf %20, %21 : vector<8x32xf32>
    %23 = vector.extract_strided_slice %6 {offsets = [24, 0], sizes = [8, 32], strides = [1, 1]} : vector<48x32xf32> to vector<8x32xf32>
    %24 = arith.mulf %22, %23 : vector<8x32xf32>
    %25 = vector.extract_strided_slice %6 {offsets = [16, 0], sizes = [8, 32], strides = [1, 1]} : vector<48x32xf32> to vector<8x32xf32>
    %26 = arith.mulf %24, %25 : vector<8x32xf32>
    %27 = vector.extract_strided_slice %6 {offsets = [8, 0], sizes = [8, 32], strides = [1, 1]} : vector<48x32xf32> to vector<8x32xf32>
    %28 = arith.mulf %26, %27 : vector<8x32xf32>
    %29 = arith.mulf %8, %28 : vector<8x32xf32>
    %30 = arith.mulf %29, %7 : vector<8x32xf32>
    %c0_9 = arith.constant 0 : index
    %c0_10 = arith.constant 0 : index
    %31 = vector.load %arg12[%c0_9, %c0_10] : memref<48x32xf32, #tpu.memory_space<vmem>>, vector<8x32xf32>
    tpu.vector_store %arg12[%c0_9, %c0_10], %30 {strides = array<i32>} : memref<48x32xf32, #tpu.memory_space<vmem>>, vector<8x32xf32>,
    %32 = arith.mulf %10, %26 : vector<8x32xf32>
    %33 = arith.mulf %32, %7 : vector<8x32xf32>
    %c8 = arith.constant 8 : index
    %c0_11 = arith.constant 0 : index
    %34 = vector.load %arg12[%c8, %c0_11] : memref<48x32xf32, #tpu.memory_space<vmem>>, vector<8x32xf32>
    tpu.vector_store %arg12[%c8, %c0_11], %33 {strides = array<i32>} : memref<48x32xf32, #tpu.memory_space<vmem>>, vector<8x32xf32>,
    %35 = arith.mulf %12, %24 : vector<8x32xf32>
    %36 = arith.mulf %35, %7 : vector<8x32xf32>
    %c16 = arith.constant 16 : index
    %c0_12 = arith.constant 0 : index
    %37 = vector.load %arg12[%c16, %c0_12] : memref<48x32xf32, #tpu.memory_space<vmem>>, vector<8x32xf32>
    tpu.vector_store %arg12[%c16, %c0_12], %36 {strides = array<i32>} : memref<48x32xf32, #tpu.memory_space<vmem>>, vector<8x32xf32>,
    %38 = arith.mulf %14, %22 : vector<8x32xf32>
    %39 = arith.mulf %38, %7 : vector<8x32xf32>
    %c24 = arith.constant 24 : index
    %c0_13 = arith.constant 0 : index
    %40 = vector.load %arg12[%c24, %c0_13] : memref<48x32xf32, #tpu.memory_space<vmem>>, vector<8x32xf32>
    tpu.vector_store %arg12[%c24, %c0_13], %39 {strides = array<i32>} : memref<48x32xf32, #tpu.memory_space<vmem>>, vector<8x32xf32>,
    %41 = arith.mulf %16, %20 : vector<8x32xf32>
    %42 = arith.mulf %41, %7 : vector<8x32xf32>
    %c32 = arith.constant 32 : index
    %c0_14 = arith.constant 0 : index
    %43 = vector.load %arg12[%c32, %c0_14] : memref<48x32xf32, #tpu.memory_space<vmem>>, vector<8x32xf32>
    tpu.vector_store %arg12[%c32, %c0_14], %42 {strides = array<i32>} : memref<48x32xf32, #tpu.memory_space<vmem>>, vector<8x32xf32>,
    %44 = arith.mulf %18, %8 : vector<8x32xf32>
    %45 = arith.mulf %44, %7 : vector<8x32xf32>
    %c40 = arith.constant 40 : index
    %c0_15 = arith.constant 0 : index
    %46 = vector.load %arg12[%c40, %c0_15] : memref<48x32xf32, #tpu.memory_space<vmem>>, vector<8x32xf32>
    tpu.vector_store %arg12[%c40, %c0_15], %45 {strides = array<i32>} : memref<48x32xf32, #tpu.memory_space<vmem>>, vector<8x32xf32>,
    %c0_16 = arith.constant 0 : index
    %c0_17 = arith.constant 0 : index
    %47 = vector.load %arg3[%c0_16, %c0_17] : memref<16x48xbf16, #tpu.memory_space<vmem>>, vector<16x48xbf16>
    %c0_18 = arith.constant 0 : index
    %c0_19 = arith.constant 0 : index
    %48 = vector.load %arg12[%c0_18, %c0_19] : memref<48x32xf32, #tpu.memory_space<vmem>>, vector<48x32xf32>
    %49 = arith.truncf %48 : vector<48x32xf32> to vector<48x32xbf16>
    %cst_20 = arith.constant dense<0.000000e+00> : vector<16x32xf32>
    %50 = tpu.matmul %47, %49, %cst_20 {dimension_numbers = #tpu.dot_dimension_numbers<[1], [0], [0], [1], [0, 0, 1, 1], [], []>} : vector<16x48xbf16>, vector<48x32xbf16>, vector<16x32xf32> -> vector<16x32xf32>
    %51 = tpu.iota {dimensions = array<i32: 0>} : vector<16x32xi32>
    %c0_i32 = arith.constant 0 : i32
    %52 = vector.broadcast %c0_i32 : i32 to vector<16x32xi32>
    %53 = arith.cmpi eq, %51, %52 : vector<16x32xi32>
    %cst_21 = arith.constant 0.000000e+00 : f32
    %54 = vector.broadcast %cst_21 : f32 to vector<16x32xf32>
    %55 = arith.select %53, %54, %1 : vector<16x32xi1>, vector<16x32xf32>
    %56 = arith.truncf %55 : vector<16x32xf32> to vector<16x32xbf16>
    %57 = arith.truncf %50 : vector<16x32xf32> to vector<16x32xbf16>
    %c0_22 = arith.constant 0 : index
    %c0_23 = arith.constant 0 : index
    %58 = vector.load %arg6[%c0_22, %c0_23] : memref<32x32xbf16, #tpu.memory_space<vmem>>, vector<32x32xbf16>
    %cst_24 = arith.constant dense<0.000000e+00> : vector<16x32xf32>
    %59 = tpu.matmul %57, %58, %cst_24 {dimension_numbers = #tpu.dot_dimension_numbers<[1], [0], [0], [1], [0, 0, 1, 1], [], []>} : vector<16x32xbf16>, vector<32x32xbf16>, vector<16x32xf32> -> vector<16x32xf32>
    %c0_25 = arith.constant 0 : index
    %c0_26 = arith.constant 0 : index
    %60 = vector.load %arg7[%c0_25, %c0_26] : memref<32x32xbf16, #tpu.memory_space<vmem>>, vector<32x32xbf16>
    %cst_27 = arith.constant dense<0.000000e+00> : vector<16x32xf32>
    %61 = tpu.matmul %56, %60, %cst_27 {dimension_numbers = #tpu.dot_dimension_numbers<[1], [0], [0], [1], [0, 0, 1, 1], [], []>} : vector<16x32xbf16>, vector<32x32xbf16>, vector<16x32xf32> -> vector<16x32xf32>
    %62 = arith.addf %59, %61 : vector<16x32xf32>
    %c0_28 = arith.constant 0 : index
    %c0_29 = arith.constant 0 : index
    %63 = vector.load %arg8[%c0_28, %c0_29] : memref<1x32xf32, #tpu.memory_space<vmem>>, vector<1x32xf32>
    %64 = vector.broadcast %63 : vector<1x32xf32> to vector<16x32xf32>
    %65 = arith.addf %62, %64 : vector<16x32xf32>
    %cst_30 = arith.constant dense<0.000000e+00> : vector<16xf32>
    %66 = vector.multi_reduction <add>, %65, %cst_30 [1] : vector<16x32xf32> to vector<16xf32>
    %67 = vector.shape_cast %66 : vector<16xf32> to vector<16x1xf32>
    %cst_31 = arith.constant 3.200000e+01 : f32
    %68 = vector.broadcast %cst_31 : f32 to vector<16x1xf32>
    %69 = arith.divf %67, %68 : vector<16x1xf32>
    %70 = vector.broadcast %69 : vector<16x1xf32> to vector<16x32xf32>
    %71 = arith.subf %65, %70 : vector<16x32xf32>
    %72 = arith.mulf %71, %71 : vector<16x32xf32>
    %cst_32 = arith.constant dense<0.000000e+00> : vector<16xf32>
    %73 = vector.multi_reduction <add>, %72, %cst_32 [1] : vector<16x32xf32> to vector<16xf32>
    %74 = vector.shape_cast %73 : vector<16xf32> to vector<16x1xf32>
    %cst_33 = arith.constant 3.200000e+01 : f32
    %75 = vector.broadcast %cst_33 : f32 to vector<16x1xf32>
    %76 = arith.divf %74, %75 : vector<16x1xf32>
    %77 = vector.broadcast %69 : vector<16x1xf32> to vector<16x32xf32>
    %78 = arith.subf %65, %77 : vector<16x32xf32>
    %cst_34 = arith.constant 9.99999974E-6 : f32
    %79 = vector.broadcast %cst_34 : f32 to vector<16x1xf32>
    %80 = arith.addf %76, %79 : vector<16x1xf32>
    %81 = math.rsqrt %80 : vector<16x1xf32>
    %82 = vector.broadcast %81 : vector<16x1xf32> to vector<16x32xf32>
    %83 = arith.mulf %78, %82 : vector<16x32xf32>
    %c0_35 = arith.constant 0 : index
    %c0_36 = arith.constant 0 : index
    %84 = vector.load %arg9[%c0_35, %c0_36] : memref<1x32xf32, #tpu.memory_space<vmem>>, vector<1x32xf32>
    %85 = vector.broadcast %84 : vector<1x32xf32> to vector<16x32xf32>
    %86 = arith.mulf %83, %85 : vector<16x32xf32>
    %c0_37 = arith.constant 0 : index
    %c0_38 = arith.constant 0 : index
    %87 = vector.load %arg10[%c0_37, %c0_38] : memref<1x32xf32, #tpu.memory_space<vmem>>, vector<1x32xf32>
    %88 = vector.broadcast %87 : vector<1x32xf32> to vector<16x32xf32>
    %89 = arith.addf %86, %88 : vector<16x32xf32>
    %c0_39 = arith.constant 0 : index
    %c0_40 = arith.constant 0 : index
    %c0_41 = arith.constant 0 : index
    %90 = vector.load %arg11[%c0_39, %c0_40, %c0_41] : memref<1x16x32xf32, #tpu.memory_space<vmem>>, vector<1x16x32xf32>
    %91 = vector.shape_cast %90 : vector<1x16x32xf32> to vector<16x32xf32>
    %92 = vector.shape_cast %89 : vector<16x32xf32> to vector<1x16x32xf32>
    tpu.vector_store %arg11[%c0_39, %c0_40, %c0_41], %92 {strides = array<i32>} : memref<1x16x32xf32, #tpu.memory_space<vmem>>, vector<1x16x32xf32>,
    return
  }
  func.func @transform_0(%arg0: i32) -> (i32, i32, i32) {
    %c0_i32 = arith.constant 0 : i32
    %c0_i32_0 = arith.constant 0 : i32
    %c0_i32_1 = arith.constant 0 : i32
    return %arg0, %c0_i32, %c0_i32_0 : i32, i32, i32
  }
  func.func @transform_1(%arg0: i32) -> (i32, i32) {
    %c0_i32 = arith.constant 0 : i32
    %c0_i32_0 = arith.constant 0 : i32
    %c0_i32_1 = arith.constant 0 : i32
    return %c0_i32, %c0_i32_0 : i32, i32
  }
  func.func @transform_2(%arg0: i32) -> (i32, i32) {
    %c0_i32 = arith.constant 0 : i32
    %c0_i32_0 = arith.constant 0 : i32
    %c0_i32_1 = arith.constant 0 : i32
    return %c0_i32, %c0_i32_0 : i32, i32
  }
  func.func @transform_3(%arg0: i32) -> (i32, i32) {
    %c0_i32 = arith.constant 0 : i32
    %c0_i32_0 = arith.constant 0 : i32
    %c0_i32_1 = arith.constant 0 : i32
    return %c0_i32, %c0_i32_0 : i32, i32
  }
  func.func @transform_4(%arg0: i32) -> (i32, i32) {
    %c0_i32 = arith.constant 0 : i32
    %c0_i32_0 = arith.constant 0 : i32
    %c0_i32_1 = arith.constant 0 : i32
    return %c0_i32, %c0_i32_0 : i32, i32
  }
  func.func @transform_5(%arg0: i32) -> (i32, i32) {
    %c0_i32 = arith.constant 0 : i32
    %c0_i32_0 = arith.constant 0 : i32
    %c0_i32_1 = arith.constant 0 : i32
    return %c0_i32, %c0_i32_0 : i32, i32
  }
  func.func @transform_6(%arg0: i32) -> (i32, i32) {
    %c0_i32 = arith.constant 0 : i32
    %c0_i32_0 = arith.constant 0 : i32
    %c0_i32_1 = arith.constant 0 : i32
    return %c0_i32, %c0_i32_0 : i32, i32
  }
  func.func @transform_7(%arg0: i32) -> (i32, i32) {
    %c0_i32 = arith.constant 0 : i32
    %c0_i32_0 = arith.constant 0 : i32
    %c0_i32_1 = arith.constant 0 : i32
    return %c0_i32, %c0_i32_0 : i32, i32
  }
  func.func @transform_8(%arg0: i32) -> (i32, i32) {
    %c0_i32 = arith.constant 0 : i32
    %c0_i32_0 = arith.constant 0 : i32
    %c0_i32_1 = arith.constant 0 : i32
    return %c0_i32, %c0_i32_0 : i32, i32
  }
  func.func @transform_9(%arg0: i32) -> (i32, i32) {
    %c0_i32 = arith.constant 0 : i32
    %c0_i32_0 = arith.constant 0 : i32
    %c0_i32_1 = arith.constant 0 : i32
    return %c0_i32, %c0_i32_0 : i32, i32
  }
  func.func @transform_10(%arg0: i32) -> (i32, i32, i32) {
    %c0_i32 = arith.constant 0 : i32
    %c0_i32_0 = arith.constant 0 : i32
    %c0_i32_1 = arith.constant 0 : i32
    return %arg0, %c0_i32, %c0_i32_0 : i32, i32, i32
  }
}

</mosaic_0001>

<llo_original>
// kernel: tpu_custom_call.1
$region0: #{tpu_custom_call.1}
  #allocation0 [shape = 'u32[]', space=smem, size = 0x4, offset = 0x4, fixed_abs, tag = 'smem constant byte address 0x4 - core index']
  #allocation1 [shape = 'u32[72,128]{1,0:T(1,128)}', space=vmem, size = 0x9000, scoped, tag = 'internal scratch']
  #allocation2 [shape = 'f32[48,32]{1,0:T(8,128)}', space=vmem, size = 0x6000, scoped, tag = 'scratch operand']
  %s0 = inlined_call_operand.vmem [shape: f32[2,16,32], index: 0, kind: input, shape index: {}]
  %s1 = inlined_call_operand.vmem [shape: bf16[48,16], index: 1, kind: input, shape index: {}]
  %s2 = inlined_call_operand.vmem [shape: bf16[16,48], index: 2, kind: input, shape index: {}]
  %s3 = inlined_call_operand.vmem [shape: f32[48,32], index: 3, kind: input, shape index: {}]
  %s4 = inlined_call_operand.vmem [shape: f32[8,32], index: 4, kind: input, shape index: {}]
  %s5 = inlined_call_operand.vmem [shape: bf16[32,32], index: 5, kind: input, shape index: {}]
  %s6 = inlined_call_operand.vmem [shape: bf16[32,32], index: 6, kind: input, shape index: {}]
  %s7 = inlined_call_operand.vmem [shape: f32[1,32], index: 7, kind: input, shape index: {}]
  %s8 = inlined_call_operand.vmem [shape: f32[1,32], index: 8, kind: input, shape index: {}]
  %s9 = inlined_call_operand.vmem [shape: f32[1,32], index: 9, kind: input, shape index: {}]
  %s10 = inlined_call_operand.hbm [shape: f32[2,16,32], index: 10, kind: output, shape index: {}]
  %s11 = sld [smem:[#allocation0]]
  $region73: #{tpu_custom_call.1} parent=0
    _
  %s13 = ssub.s32 1, %s11
  %s14 = scalar_select 0, %s13, %s11
  $region1: #{tpu_custom_call.1} parent=0
    #allocation3 [shape = 'u8[16384]{0}', space=vmem, size = 0x4000, scoped, tag = 'output window, operand 0']
    #allocation4 [shape = 's32[2]{0}', space=sflag, size = 0x8, scoped, tag = 'scoped memory for tpu_custom_call.1']
    %15 = vsyncpa [#allocation4], 0
    %s16 = scalar_lea.sflag [#allocation4], 1
    %17 = vsyncpa %s16, 0
    loop: start=0, step=1, limit=4
    $region2: #{tpu_custom_call.1} parent=1 // loop_pre_header
      _
    $region3: #{tpu_custom_call.1} parent=1 // loop_header
      %s19 = sphi 0, %s23
      %p20 = scmp.ge.s32.totalorder %s19, 4
      %s29 = sphi 0, %s31
      %s32 = sphi 0, %s29
      %s33 = sphi 0, %s32
      %s49 = sphi 0, %s33
      %s53 = sphi 0, %s53
      %s55 = sphi 0, %s53
      %s56 = sphi 0, %s55
      %s70 = sphi 0, %s56
      %s74 = sphi 0, %s74
      %s76 = sphi 0, %s74
      %s77 = sphi 0, %s76
      %s91 = sphi 0, %s77
      %s95 = sphi 0, %s95
      %s97 = sphi 0, %s95
      %s98 = sphi 0, %s97
      %s112 = sphi 0, %s98
      %s116 = sphi 0, %s116
      %s118 = sphi 0, %s116
      %s119 = sphi 0, %s118
      %s133 = sphi 0, %s119
      %s137 = sphi 0, %s137
      %s139 = sphi 0, %s137
      %s140 = sphi 0, %s139
      %s154 = sphi 0, %s140
      %s158 = sphi 0, %s158
      %s160 = sphi 0, %s158
      %s161 = sphi 0, %s160
      %s175 = sphi 0, %s161
      %s179 = sphi 0, %s179
      %s181 = sphi 0, %s179
      %s182 = sphi 0, %s181
      %s196 = sphi 0, %s182
      %s200 = sphi 0, %s200
      %s202 = sphi 0, %s200
      %s203 = sphi 0, %s202
      %s217 = sphi 0, %s203
      %s221 = sphi 0, %s221
      %s223 = sphi 0, %s221
      %s224 = sphi 0, %s223
      %s238 = sphi 0, %s224
      %s244 = sphi 0, %s246
      %s247 = sphi 0, %s244
      %s248 = sphi 0, %s247
      %s264 = sphi 0, %s248
    $region4: #{tpu_custom_call.1} parent=1 // loop_header_branch
      %22 = sbr.rel (%p20) target = $region8
    $region5: #{tpu_custom_call.1} parent=1 // loop_body
      %s24 = ssub.s32 %s19, 1
      %s25 = ssub.s32 %s19, 2
      %s26 = sadd.s32 %s19, 1
      %s27 = ssub.s32 %s19, %s26
      %p28 = scmp.eq.s32.totalorder %s27, 0
      %s30 = sadd.s32 %s29, 1
      %s31 = scalar_select %p28, %s29, %s30
      %p34 = pneg %p28
      %p35 = scmp.eq.s32.totalorder %s19, 1
      %p36 = por %p34, %p35
      %p37 = scmp.ne.s32.totalorder %s29, %s32
      %p38 = scmp.eq.s32.totalorder %s19, 0
      %p39 = por %p37, %p38
      %p40 = scmp.ne.s32.totalorder %s29, %s32
      %p41 = scmp.eq.s32.totalorder %s24, 1
      %p42 = por %p40, %p41
      %p43 = scmp.ne.s32.totalorder %s32, %s33
      %p44 = scmp.eq.s32.totalorder %s24, 0
      %p45 = por %p43, %p44
      %p46 = scmp.ne.s32.totalorder %s32, %s33
      %p47 = scmp.eq.s32.totalorder %s25, 1
      %p48 = por %p46, %p47
      %p50 = scmp.ne.s32.totalorder %s33, %s49
      %p51 = scmp.eq.s32.totalorder %s25, 0
      %p52 = por %p50, %p51
      %s54 = sadd.s32 %s53, 1
      %p57 = scmp.eq.s32.totalorder %s19, 1
      %p58 = scmp.ne.s32.totalorder %s53, %s55
      %p59 = scmp.eq.s32.totalorder %s19, 0
      %p60 = por %p58, %p59
      %p61 = scmp.ne.s32.totalorder %s53, %s55
      %p62 = scmp.eq.s32.totalorder %s24, 1
      %p63 = por %p61, %p62
      %p64 = scmp.ne.s32.totalorder %s55, %s56
      %p65 = scmp.eq.s32.totalorder %s24, 0
      %p66 = por %p64, %p65
      %p67 = scmp.ne.s32.totalorder %s55, %s56
      %p68 = scmp.eq.s32.totalorder %s25, 1
      %p69 = por %p67, %p68
      %p71 = scmp.ne.s32.totalorder %s56, %s70
      %p72 = scmp.eq.s32.totalorder %s25, 0
      %p73 = por %p71, %p72
      %s75 = sadd.s32 %s74, 1
      %p78 = scmp.eq.s32.totalorder %s19, 1
      %p79 = scmp.ne.s32.totalorder %s74, %s76
      %p80 = scmp.eq.s32.totalorder %s19, 0
      %p81 = por %p79, %p80
      %p82 = scmp.ne.s32.totalorder %s74, %s76
      %p83 = scmp.eq.s32.totalorder %s24, 1
      %p84 = por %p82, %p83
      %p85 = scmp.ne.s32.totalorder %s76, %s77
      %p86 = scmp.eq.s32.totalorder %s24, 0
      %p87 = por %p85, %p86
      %p88 = scmp.ne.s32.totalorder %s76, %s77
      %p89 = scmp.eq.s32.totalorder %s25, 1
      %p90 = por %p88, %p89
      %p92 = scmp.ne.s32.totalorder %s77, %s91
      %p93 = scmp.eq.s32.totalorder %s25, 0
      %p94 = por %p92, %p93
      %s96 = sadd.s32 %s95, 1
      %p99 = scmp.eq.s32.totalorder %s19, 1
      %p100 = scmp.ne.s32.totalorder %s95, %s97
      %p101 = scmp.eq.s32.totalorder %s19, 0
      %p102 = por %p100, %p101
      %p103 = scmp.ne.s32.totalorder %s95, %s97
      %p104 = scmp.eq.s32.totalorder %s24, 1
      %p105 = por %p103, %p104
      %p106 = scmp.ne.s32.totalorder %s97, %s98
      %p107 = scmp.eq.s32.totalorder %s24, 0
      %p108 = por %p106, %p107
      %p109 = scmp.ne.s32.totalorder %s97, %s98
      %p110 = scmp.eq.s32.totalorder %s25, 1
      %p111 = por %p109, %p110
      %p113 = scmp.ne.s32.totalorder %s98, %s112
      %p114 = scmp.eq.s32.totalorder %s25, 0
      %p115 = por %p113, %p114
      %s117 = sadd.s32 %s116, 1
      %p120 = scmp.eq.s32.totalorder %s19, 1
      %p121 = scmp.ne.s32.totalorder %s116, %s118
      %p122 = scmp.eq.s32.totalorder %s19, 0
      %p123 = por %p121, %p122
      %p124 = scmp.ne.s32.totalorder %s116, %s118
      %p125 = scmp.eq.s32.totalorder %s24, 1
      %p126 = por %p124, %p125
      %p127 = scmp.ne.s32.totalorder %s118, %s119
      %p128 = scmp.eq.s32.totalorder %s24, 0
      %p129 = por %p127, %p128
      %p130 = scmp.ne.s32.totalorder %s118, %s119
      %p131 = scmp.eq.s32.totalorder %s25, 1
      %p132 = por %p130, %p131
      %p134 = scmp.ne.s32.totalorder %s119, %s133
      %p135 = scmp.eq.s32.totalorder %s25, 0
      %p136 = por %p134, %p135
      %s138 = sadd.s32 %s137, 1
      %p141 = scmp.eq.s32.totalorder %s19, 1
      %p142 = scmp.ne.s32.totalorder %s137, %s139
      %p143 = scmp.eq.s32.totalorder %s19, 0
      %p144 = por %p142, %p143
      %p145 = scmp.ne.s32.totalorder %s137, %s139
      %p146 = scmp.eq.s32.totalorder %s24, 1
      %p147 = por %p145, %p146
      %p148 = scmp.ne.s32.totalorder %s139, %s140
      %p149 = scmp.eq.s32.totalorder %s24, 0
      %p150 = por %p148, %p149
      %p151 = scmp.ne.s32.totalorder %s139, %s140
      %p152 = scmp.eq.s32.totalorder %s25, 1
      %p153 = por %p151, %p152
      %p155 = scmp.ne.s32.totalorder %s140, %s154
      %p156 = scmp.eq.s32.totalorder %s25, 0
      %p157 = por %p155, %p156
      %s159 = sadd.s32 %s158, 1
      %p162 = scmp.eq.s32.totalorder %s19, 1
      %p163 = scmp.ne.s32.totalorder %s158, %s160
      %p164 = scmp.eq.s32.totalorder %s19, 0
      %p165 = por %p163, %p164
      %p166 = scmp.ne.s32.totalorder %s158, %s160
      %p167 = scmp.eq.s32.totalorder %s24, 1
      %p168 = por %p166, %p167
      %p169 = scmp.ne.s32.totalorder %s160, %s161
      %p170 = scmp.eq.s32.totalorder %s24, 0
      %p171 = por %p169, %p170
      %p172 = scmp.ne.s32.totalorder %s160, %s161
      %p173 = scmp.eq.s32.totalorder %s25, 1
      %p174 = por %p172, %p173
      %p176 = scmp.ne.s32.totalorder %s161, %s175
      %p177 = scmp.eq.s32.totalorder %s25, 0
      %p178 = por %p176, %p177
      %s180 = sadd.s32 %s179, 1
      %p183 = scmp.eq.s32.totalorder %s19, 1
      %p184 = scmp.ne.s32.totalorder %s179, %s181
      %p185 = scmp.eq.s32.totalorder %s19, 0
      %p186 = por %p184, %p185
      %p187 = scmp.ne.s32.totalorder %s179, %s181
      %p188 = scmp.eq.s32.totalorder %s24, 1
      %p189 = por %p187, %p188
      %p190 = scmp.ne.s32.totalorder %s181, %s182
      %p191 = scmp.eq.s32.totalorder %s24, 0
      %p192 = por %p190, %p191
      %p193 = scmp.ne.s32.totalorder %s181, %s182
      %p194 = scmp.eq.s32.totalorder %s25, 1
      %p195 = por %p193, %p194
      %p197 = scmp.ne.s32.totalorder %s182, %s196
      %p198 = scmp.eq.s32.totalorder %s25, 0
      %p199 = por %p197, %p198
      %s201 = sadd.s32 %s200, 1
      %p204 = scmp.eq.s32.totalorder %s19, 1
      %p205 = scmp.ne.s32.totalorder %s200, %s202
      %p206 = scmp.eq.s32.totalorder %s19, 0
      %p207 = por %p205, %p206
      %p208 = scmp.ne.s32.totalorder %s200, %s202
      %p209 = scmp.eq.s32.totalorder %s24, 1
      %p210 = por %p208, %p209
      %p211 = scmp.ne.s32.totalorder %s202, %s203
      %p212 = scmp.eq.s32.totalorder %s24, 0
      %p213 = por %p211, %p212
      %p214 = scmp.ne.s32.totalorder %s202, %s203
      %p215 = scmp.eq.s32.totalorder %s25, 1
      %p216 = por %p214, %p215
      %p218 = scmp.ne.s32.totalorder %s203, %s217
      %p219 = scmp.eq.s32.totalorder %s25, 0
      %p220 = por %p218, %p219
      %s222 = sadd.s32 %s221, 1
      %p225 = scmp.eq.s32.totalorder %s19, 1
      %p226 = scmp.ne.s32.totalorder %s221, %s223
      %p227 = scmp.eq.s32.totalorder %s19, 0
      %p228 = por %p226, %p227
      %p229 = scmp.ne.s32.totalorder %s221, %s223
      %p230 = scmp.eq.s32.totalorder %s24, 1
      %p231 = por %p229, %p230
      %p232 = scmp.ne.s32.totalorder %s223, %s224
      %p233 = scmp.eq.s32.totalorder %s24, 0
      %p234 = por %p232, %p233
      %p235 = scmp.ne.s32.totalorder %s223, %s224
      %p236 = scmp.eq.s32.totalorder %s25, 1
      %p237 = por %p235, %p236
      %p239 = scmp.ne.s32.totalorder %s224, %s238
      %p240 = scmp.eq.s32.totalorder %s25, 0
      %p241 = por %p239, %p240
      %s242 = ssub.s32 %s19, %s26
      %p243 = scmp.eq.s32.totalorder %s242, 0
      %s245 = sadd.s32 %s244, 1
      %s246 = scalar_select %p243, %s244, %s245
      %p249 = pneg %p243
      %p250 = scmp.eq.s32.totalorder %s19, 1
      %p251 = por %p249, %p250
      %p252 = scmp.ne.s32.totalorder %s244, %s247
      %p253 = scmp.eq.s32.totalorder %s19, 0
      %p254 = por %p252, %p253
      %p255 = scmp.ne.s32.totalorder %s244, %s247
      %p256 = scmp.eq.s32.totalorder %s24, 1
      %p257 = por %p255, %p256
      %p258 = scmp.ne.s32.totalorder %s247, %s248
      %p259 = scmp.eq.s32.totalorder %s24, 0
      %p260 = por %p258, %p259
      %p261 = scmp.ne.s32.totalorder %s247, %s248
      %p262 = scmp.eq.s32.totalorder %s25, 1
      %p263 = por %p261, %p262
      %p265 = scmp.ne.s32.totalorder %s248, %s264
      %p266 = scmp.eq.s32.totalorder %s25, 0
      %p267 = por %p265, %p266
      %p268 = scmp.le.s32.totalorder 1, %s19
      %p269 = scmp.lt.s32.totalorder %s19, 3
      %p270 = pnand %p268, %p269
      %p271 = pneg %p270
      // Predicated region
      $region9: #{tpu_custom_call.1} parent=5 // pred_check
        _
      $region10: #{tpu_custom_call.1} parent=5 // pred_check_branch
        %273 = sbr.rel (%p270) target = $region12
      $region11: #{tpu_custom_call.1} parent=5 // pred_region
        %s274 = ssub.s32 %s19, 1
        // Predicated region
        $region13: #{tpu_custom_call.1} parent=11 // pred_check
          %p275 = pneg %p66
        $region14: #{tpu_custom_call.1} parent=11 // pred_check_branch
          %277 = sbr.rel (%p275) target = $region16
        $region15: #{tpu_custom_call.1} parent=11 // pred_region
          _
        $region16: #{tpu_custom_call.1} parent=11 // pred_fallthru
          _
        // Predicated region
        $region17: #{tpu_custom_call.1} parent=11 // pred_check
          %p278 = pneg %p87
        $region18: #{tpu_custom_call.1} parent=11 // pred_check_branch
          %280 = sbr.rel (%p278) target = $region20
        $region19: #{tpu_custom_call.1} parent=11 // pred_region
          _
        $region20: #{tpu_custom_call.1} parent=11 // pred_fallthru
          _
        // Predicated region
        $region21: #{tpu_custom_call.1} parent=11 // pred_check
          %p281 = pneg %p108
        $region22: #{tpu_custom_call.1} parent=11 // pred_check_branch
          %283 = sbr.rel (%p281) target = $region24
        $region23: #{tpu_custom_call.1} parent=11 // pred_region
          _
        $region24: #{tpu_custom_call.1} parent=11 // pred_fallthru
          _
        // Predicated region
        $region25: #{tpu_custom_call.1} parent=11 // pred_check
          %p284 = pneg %p129
        $region26: #{tpu_custom_call.1} parent=11 // pred_check_branch
          %286 = sbr.rel (%p284) target = $region28
        $region27: #{tpu_custom_call.1} parent=11 // pred_region
          _
        $region28: #{tpu_custom_call.1} parent=11 // pred_fallthru
          _
        // Predicated region
        $region29: #{tpu_custom_call.1} parent=11 // pred_check
          %p287 = pneg %p150
        $region30: #{tpu_custom_call.1} parent=11 // pred_check_branch
          %289 = sbr.rel (%p287) target = $region32
        $region31: #{tpu_custom_call.1} parent=11 // pred_region
          _
        $region32: #{tpu_custom_call.1} parent=11 // pred_fallthru
          _
        // Predicated region
        $region33: #{tpu_custom_call.1} parent=11 // pred_check
          %p290 = pneg %p171
        $region34: #{tpu_custom_call.1} parent=11 // pred_check_branch
          %292 = sbr.rel (%p290) target = $region36
        $region35: #{tpu_custom_call.1} parent=11 // pred_region
          _
        $region36: #{tpu_custom_call.1} parent=11 // pred_fallthru
          _
        // Predicated region
        $region37: #{tpu_custom_call.1} parent=11 // pred_check
          %p293 = pneg %p192
        $region38: #{tpu_custom_call.1} parent=11 // pred_check_branch
          %295 = sbr.rel (%p293) target = $region40
        $region39: #{tpu_custom_call.1} parent=11 // pred_region
          _
        $region40: #{tpu_custom_call.1} parent=11 // pred_fallthru
          _
        // Predicated region
        $region41: #{tpu_custom_call.1} parent=11 // pred_check
          %p296 = pneg %p213
        $region42: #{tpu_custom_call.1} parent=11 // pred_check_branch
          %298 = sbr.rel (%p296) target = $region44
        $region43: #{tpu_custom_call.1} parent=11 // pred_region
          _
        $region44: #{tpu_custom_call.1} parent=11 // pred_fallthru
          _
        // Predicated region
        $region45: #{tpu_custom_call.1} parent=11 // pred_check
          %p299 = pneg %p234
        $region46: #{tpu_custom_call.1} parent=11 // pred_check_branch
          %301 = sbr.rel (%p299) target = $region48
        $region47: #{tpu_custom_call.1} parent=11 // pred_region
          _
        $region48: #{tpu_custom_call.1} parent=11 // pred_fallthru
          _
      $region12: #{tpu_custom_call.1} parent=5 // pred_fallthru
        _
      %p302 = scmp.lt.s32.totalorder %s19, 2
      // Predicated region
      $region49: #{tpu_custom_call.1} parent=5 // pred_check
        %p303 = pneg %p302
      $region50: #{tpu_custom_call.1} parent=5 // pred_check_branch
        %305 = sbr.rel (%p303) target = $region52
      $region51: #{tpu_custom_call.1} parent=5 // pred_region
        // Predicated region
        $region53: #{tpu_custom_call.1} parent=51 // pred_check
          %p306 = pneg %p39
        $region54: #{tpu_custom_call.1} parent=51 // pred_check_branch
          %308 = sbr.rel (%p306) target = $region56
        $region55: #{tpu_custom_call.1} parent=51 // pred_region
          %p309 = scmp.lt.s32.totalorder %s19, 1
          %s310 = scalar_select %p309, %s19, 1
          %s311 = smul.addr %s310, 2
          %s312 = smul.addr %s311, 8
          %s313 = scalar_lea.vmem %s0, %s312
        $region56: #{tpu_custom_call.1} parent=51 // pred_fallthru
          _
      $region52: #{tpu_custom_call.1} parent=5 // pred_fallthru
        _
      %p314 = scmp.le.s32.totalorder 1, %s19
      %p315 = scmp.lt.s32.totalorder %s19, 3
      %p316 = pnand %p314, %p315
      %p317 = pneg %p316
      // Predicated region
      $region57: #{tpu_custom_call.1} parent=5 // pred_check
        _
      $region58: #{tpu_custom_call.1} parent=5 // pred_check_branch
        %319 = sbr.rel (%p316) target = $region60
      $region59: #{tpu_custom_call.1} parent=5 // pred_region
        %s320 = ssub.s32 %s19, 1
        %p321 = scmp.lt.s32.totalorder %s24, 1
        %s322 = scalar_select %p321, %s24, 1
        %s323 = smul.addr %s322, 2
        %s324 = smul.addr %s323, 8
        %s325 = scalar_lea.vmem %s0, %s324
        %p326 = pneg %p45
        %p327 = pneg %p42
        %p328 = pneg %p66
        %p329 = pneg %p63
        %p330 = pneg %p87
        %p331 = pneg %p84
        %p332 = pneg %p108
        %p333 = pneg %p105
        %p334 = pneg %p129
        %p335 = pneg %p126
        %p336 = pneg %p150
        %p337 = pneg %p147
        %p338 = pneg %p171
        %p339 = pneg %p168
        %p340 = pneg %p192
        %p341 = pneg %p189
        %p342 = pneg %p213
        %p343 = pneg %p210
        %p344 = pneg %p234
        %p345 = pneg %p231
        %p346 = pneg %p260
        %p347 = pneg %p257
        %s348 = sand.u32 %s247, 1
        %s349 = scalar_lea.sflag [#allocation4], %s348
        %s350 = sand.u32 %s247, 1
        %s351 = smul.addr %s350, 16
        %s352 = scalar_lea.vmem [#allocation3], %s351
        %p353 = scmp.lt.s32.totalorder %s24, 1
        %s354 = scalar_select %p353, %s24, 1
        %s355 = smul.addr %s354, 2
        %s356 = smul.addr %s355, 8
        %s357 = scalar_lea.vmem %s0, %s356
        %v359 = vld [vmem:[%s357] sm:$0xff]
        %v360 = vld [vmem:[%s357 + $0x8] sm:$0xff]
        %v361 = vpack.c.bf16 %v360, %v359
        %v362 = vld [vmem:[%s1] sm:$0xf]
        %v363 = vld [vmem:[%s1 + $0x4] sm:$0xf]
        %v364 = vld [vmem:[%s1 + $0x8] sm:$0xf]
        %v365 = vld [vmem:[%s1 + $0xc] sm:$0xf]
        %v366 = vld [vmem:[%s1 + $0x10] sm:$0xf]
        %v367 = vld [vmem:[%s1 + $0x14] sm:$0xf]
        %v368 = vld [vmem:[%s3] sm:$0xff]
        %v369 = vld [vmem:[%s3 + $0x8] sm:$0xff]
        %v370 = vld [vmem:[%s3 + $0x10] sm:$0xff]
        %v371 = vld [vmem:[%s3 + $0x18] sm:$0xff]
        %v372 = vld [vmem:[%s3 + $0x20] sm:$0xff]
        %v373 = vld [vmem:[%s3 + $0x28] sm:$0xff]
        %v380 = vunpack.c.l.b16 %v362
        %v381 = vunpack.c.l.b16 %v363
        %v382 = vunpack.c.l.b16 %v364
        %v383 = vunpack.c.l.b16 %v365
        %v384 = vunpack.c.l.b16 %v366
        %v385 = vunpack.c.l.b16 %v367
        %v386 = vpack.c.b16 %v381, %v380
        %v387 = vpack.c.b16 %v383, %v382
        %v388 = vpack.c.b16 %v385, %v384
        %vm389 = vcmask 130048
        %v391 = vsel %vm389, %v386, 0
        %v394 = vsel %vm389, %v387, 0
        %v397 = vsel %vm389, %v388, 0
        %399 = vmatpush.bf16.msra.mxu0 0
        %400 = vmatpush.bf16.msra.mxu0 0
        %401 = vmatpush.bf16.msra.mxu0 0
        %402 = vmatpush.bf16.msra.mxu0 0
        %403 = vmatpush.bf16.msra.mxu0 0
        %404 = vmatpush.bf16.msra.mxu0 0
        %405 = vmatpush.bf16.msra.mxu0 0
        %406 = vmatpush.bf16.msra.mxu0 %v361
        %407 = vmatmul.bf16.gmra.mxu0 %v391
        %v408 = vpop.f32.mrf.mxu0
        %v409 = vadd.f32 %v368, %v408
        %v410 = vpop.f32.mrf.mxu0
        %v411 = vadd.f32 %v369, %v410
        %412 = vmatmul.bf16.gmra.mxu0 %v394
        %v413 = vpop.f32.mrf.mxu0
        %v414 = vadd.f32 %v370, %v413
        %v415 = vpop.f32.mrf.mxu0
        %v416 = vadd.f32 %v371, %v415
        %417 = vmatmul.bf16.gmra.mxu0 %v397
        %v418 = vpop.f32.mrf.mxu0
        %v419 = vadd.f32 %v372, %v418
        %v420 = vpop.f32.mrf.mxu0
        %v421 = vadd.f32 %v373, %v420
        %422 = vdwg.mxu0
        %v423 = vld [vmem:[%s4] sm:$0xff]
        %v424 = vmul.f32 %v409, %v411
        %v425 = vmul.f32 %v424, %v414
        %v426 = vmul.f32 %v425, %v416
        %v427 = vmul.f32 %v426, %v419
        %v428 = vmul.f32 %v421, %v419
        %v429 = vmul.f32 %v428, %v416
        %v430 = vmul.f32 %v429, %v414
        %v431 = vmul.f32 %v430, %v411
        %v432 = vmul.f32 %v431, %v423
        %vm433 = vcmask 261120
        %434 = vst.msk [vmem:[#allocation2] sm:$0xff] %vm433, %v432
        %v435 = vmul.f32 %v409, %v430
        %v436 = vmul.f32 %v435, %v423
        %437 = vst.msk [vmem:[#allocation2 + $0x8] sm:$0xff] %vm433, %v436
        %v438 = vmul.f32 %v424, %v429
        %v439 = vmul.f32 %v438, %v423
        %440 = vst.msk [vmem:[#allocation2 + $0x10] sm:$0xff] %vm433, %v439
        %v441 = vmul.f32 %v425, %v428
        %v442 = vmul.f32 %v441, %v423
        %443 = vst.msk [vmem:[#allocation2 + $0x18] sm:$0xff] %vm433, %v442
        %v444 = vmul.f32 %v426, %v421
        %v445 = vmul.f32 %v444, %v423
        %446 = vst.msk [vmem:[#allocation2 + $0x20] sm:$0xff] %vm433, %v445
        %v447 = vmul.f32 %v427, %v423
        %448 = vst.msk [vmem:[#allocation2 + $0x28] sm:$0xff] %vm433, %v447
        %v449 = vld [vmem:[%s2] sm:$0xf]
        %v450 = vld [vmem:[%s2 + $0x4] sm:$0xf]
        %v451 = vld [vmem:[#allocation2] sm:$0xff]
        %v452 = vld [vmem:[#allocation2 + $0x8] sm:$0xff]
        %v453 = vld [vmem:[#allocation2 + $0x10] sm:$0xff]
        %v454 = vld [vmem:[#allocation2 + $0x18] sm:$0xff]
        %v455 = vld [vmem:[#allocation2 + $0x20] sm:$0xff]
        %v456 = vld [vmem:[#allocation2 + $0x28] sm:$0xff]
        %v457 = vpack.c.bf16 %v452, %v451
        %v458 = vpack.c.bf16 %v454, %v453
        %v459 = vpack.c.bf16 %v456, %v455
        %v462 = vunpack.c.l.b16 %v449
        %v463 = vunpack.c.l.b16 %v450
        %v464 = vpack.c.b16 %v463, %v462
        %vm465 = vcmask 392192
        %v467 = vsel %vm465, %v464, 0
        %469 = vmatpush.bf16.msra.mxu0 0
        %470 = vmatpush.bf16.msra.mxu0 0
        %471 = vmatpush.bf16.msra.mxu0 0
        %472 = vmatpush.bf16.msra.mxu0 0
        %473 = vmatpush.bf16.msra.mxu0 0
        %474 = vmatpush.bf16.msra.mxu0 %v459
        %475 = vmatpush.bf16.msra.mxu0 %v458
        %476 = vmatpush.bf16.msra.mxu0 %v457
        %477 = vmatmul.bf16.gmra.mxu0 %v467
        %v478 = vpop.f32.mrf.mxu0
        %v479 = vadd.f32 0.0, %v478
        %v480 = vpop.f32.mrf.mxu0
        %v481 = vadd.f32 0.0, %v480
        %482 = vdwg.mxu0
        %v483 = vlaneseq
        %v484 = vshrl.u32 %v483, 7
        %v485 = vadd.s32 %v484, 8
        %vm486 = vcmp.eq.s32.totalorder %v484, 0
        %vm487 = vcmp.eq.s32.totalorder %v485, 0
        %v488 = vsel %vm486, 0.0, %v359
        %v489 = vsel %vm487, 0.0, %v360
        %v490 = vpack.c.bf16 %v489, %v488
        %v491 = vpack.c.bf16 %v481, %v479
        %v492 = vld [vmem:[%s5] sm:$0xf]
        %v493 = vld [vmem:[%s5 + $0x4] sm:$0xf]
        %v494 = vld [vmem:[%s5 + $0x8] sm:$0xf]
        %v495 = vld [vmem:[%s5 + $0xc] sm:$0xf]
        %v496 = vld [vmem:[%s6] sm:$0xf]
        %v497 = vld [vmem:[%s6 + $0x4] sm:$0xf]
        %v498 = vld [vmem:[%s6 + $0x8] sm:$0xf]
        %v499 = vld [vmem:[%s6 + $0xc] sm:$0xf]
        %v504 = vunpack.c.l.b16 %v496
        %v505 = vunpack.c.l.b16 %v497
        %v506 = vunpack.c.l.b16 %v498
        %v507 = vunpack.c.l.b16 %v499
        %v508 = vpack.c.b16 %v505, %v504
        %v509 = vpack.c.b16 %v507, %v506
        %v513 = vsel %vm433, %v490, 0
        %515 = vmatpush.bf16.msra.mxu0 0
        %516 = vmatpush.bf16.msra.mxu0 0
        %517 = vmatpush.bf16.msra.mxu0 0
        %518 = vmatpush.bf16.msra.mxu0 0
        %519 = vmatpush.bf16.msra.mxu0 0
        %520 = vmatpush.bf16.msra.mxu0 0
        %521 = vmatpush.bf16.msra.mxu0 %v509
        %522 = vmatpush.bf16.msra.mxu0 %v508
        %523 = vmatmul.bf16.gmra.mxu0 %v513
        %v524 = vpop.f32.mrf.mxu0
        %v525 = vadd.f32 0.0, %v524
        %v526 = vpop.f32.mrf.mxu0
        %v527 = vadd.f32 0.0, %v526
        %528 = vdwg.mxu0
        %v533 = vunpack.c.l.b16 %v492
        %v534 = vunpack.c.l.b16 %v493
        %v535 = vunpack.c.l.b16 %v494
        %v536 = vunpack.c.l.b16 %v495
        %v537 = vpack.c.b16 %v534, %v533
        %v538 = vpack.c.b16 %v536, %v535
        %v542 = vsel %vm433, %v491, 0
        %544 = vmatpush.bf16.msra.mxu0 0
        %545 = vmatpush.bf16.msra.mxu0 0
        %546 = vmatpush.bf16.msra.mxu0 0
        %547 = vmatpush.bf16.msra.mxu0 0
        %548 = vmatpush.bf16.msra.mxu0 0
        %549 = vmatpush.bf16.msra.mxu0 0
        %550 = vmatpush.bf16.msra.mxu0 %v538
        %551 = vmatpush.bf16.msra.mxu0 %v537
        %552 = vmatmul.bf16.gmra.mxu0 %v542
        %v553 = vpop.f32.mrf.mxu0
        %v554 = vadd.f32 %v525, %v553
        %v555 = vpop.f32.mrf.mxu0
        %v556 = vadd.f32 %v527, %v555
        %557 = vdwg.mxu0
        %v558 = vld [vmem:[%s7] sm:$0x1]
        %v560 = vperm.slane %v558, 0
        %v562 = vadd.f32 %v554, %v560
        %v563 = vadd.f32 %v556, %v560
        %v564 = vsel %vm433, %v562, 0.0
        %565 = vadd.xlane.f32.xlu0 %v564
        %v566 = vpop.xlane.xlu0 %565
        %v567 = vsel %vm433, %v563, 0.0
        %568 = vadd.xlane.f32.xlu0 %v567
        %v569 = vpop.xlane.xlu0 %568
        %v570 = vrcp.pop 32.0
        %v571 = vmul.f32 32.0, %v570
        %v572 = vsub.f32 1.0, %v571
        %v573 = vmul.f32 %v570, %v572
        %v574 = vadd.f32 %v570, %v573
        %vm575 = vweird.f32 %v570
        %v576 = vsel %vm575, %v570, %v574
        %v577 = vmul.f32 %v566, %v576
        %v578 = vmul.f32 %v569, %v576
        %v579 = vsub.f32 %v562, %v577
        %v580 = vsub.f32 %v563, %v578
        %v581 = vmul.f32 %v579, %v579
        %v582 = vmul.f32 %v580, %v580
        %v583 = vsel %vm433, %v581, 0.0
        %584 = vadd.xlane.f32.xlu0 %v583
        %v585 = vpop.xlane.xlu0 %584
        %v586 = vsel %vm433, %v582, 0.0
        %587 = vadd.xlane.f32.xlu0 %v586
        %v588 = vpop.xlane.xlu0 %587
        %v589 = vmul.f32 %v585, %v576
        %v590 = vmul.f32 %v588, %v576
        %v591 = vadd.f32 %v589, 1e-05
        %v592 = vadd.f32 %v590, 1e-05
        %v593 = vrsqrt.pop %v591
        %v594 = vmul.f32 %v593, %v591
        %v595 = vmul.f32 %v594, %v593
        %v596 = vmul.f32 0.5, %v595
        %v597 = vsub.f32 1.5, %v596
        %v598 = vmul.f32 %v593, %v597
        %vm599 = vweird.f32 %v591
        %vm600 = vweird.f32 %v593
        %vm601 = vmor %vm599, %vm600
        %v602 = vsel %vm601, %v593, %v598
        %v603 = vrsqrt.pop %v592
        %v604 = vmul.f32 %v603, %v592
        %v605 = vmul.f32 %v604, %v603
        %v606 = vmul.f32 0.5, %v605
        %v607 = vsub.f32 1.5, %v606
        %v608 = vmul.f32 %v603, %v607
        %vm609 = vweird.f32 %v592
        %vm610 = vweird.f32 %v603
        %vm611 = vmor %vm609, %vm610
        %v612 = vsel %vm611, %v603, %v608
        %v613 = vmul.f32 %v579, %v602
        %v614 = vmul.f32 %v580, %v612
        %v615 = vld [vmem:[%s8] sm:$0x1]
        %v617 = vperm.slane %v615, 0
        %v619 = vmul.f32 %v613, %v617
        %v620 = vmul.f32 %v614, %v617
        %v621 = vld [vmem:[%s9] sm:$0x1]
        %v623 = vperm.slane %v621, 0
        %v625 = vadd.f32 %v619, %v623
        %v626 = vadd.f32 %v620, %v623
        %627 = vst.msk [vmem:[%s352] sm:$0xff] %vm433, %v625
        %628 = vst.msk [vmem:[%s352 + $0x8] sm:$0xff] %vm433, %v626
        %s629 = sand.u32 %s247, 1
        %s630 = scalar_lea.sflag [#allocation4], %s629
        %s631 = sand.u32 %s247, 1
        %s632 = smul.addr %s631, 16
        %s633 = scalar_lea.vmem [#allocation3], %s632
        // Predicated region
        $region61: #{tpu_custom_call.1} parent=59 // pred_check
          %p634 = pneg %p257
        $region62: #{tpu_custom_call.1} parent=59 // pred_check_branch
          %636 = sbr.rel (%p634) target = $region64
        $region63: #{tpu_custom_call.1} parent=59 // pred_region
          %638 = vsyncadd %s630, 0
          %s639 = smul.addr %s24, 2
          %s640 = smul.addr %s639, 8
          %s641 = scalar_lea.hbm %s10, %s640
          %s642 = sshll.u32 %s633, 4
          %s643 = int_to_ptr.vmem [resolvable:$true] %s642
          %s644 = sshll.u32 %s641, 4
          %s645 = int_to_ptr.hbm [resolvable:$true] %s644
          %650 = dma.vmem_to_hbm [thread:$0]  %s643, 256, %s645, %s630, 128, 128, 8
        $region64: #{tpu_custom_call.1} parent=59 // pred_fallthru
          _
      $region60: #{tpu_custom_call.1} parent=5 // pred_fallthru
        _
      %p651 = scmp.le.s32.totalorder 2, %s19
      // Predicated region
      $region65: #{tpu_custom_call.1} parent=5 // pred_check
        %p652 = pneg %p651
      $region66: #{tpu_custom_call.1} parent=5 // pred_check_branch
        %654 = sbr.rel (%p652) target = $region68
      $region67: #{tpu_custom_call.1} parent=5 // pred_region
        %s655 = ssub.s32 %s19, 2
        // Predicated region
        $region69: #{tpu_custom_call.1} parent=67 // pred_check
          %p656 = pneg %p263
        $region70: #{tpu_custom_call.1} parent=67 // pred_check_branch
          %658 = sbr.rel (%p656) target = $region72
        $region71: #{tpu_custom_call.1} parent=67 // pred_region
          %s659 = sand.u32 %s248, 1
          %s660 = scalar_lea.sflag [#allocation4], %s659
          %s661 = sand.u32 %s248, 1
          %s662 = smul.addr %s661, 16
          %s663 = scalar_lea.vmem [#allocation3], %s662
          %665 = dma.done %s660, 256
        $region72: #{tpu_custom_call.1} parent=67 // pred_fallthru
          _
      $region68: #{tpu_custom_call.1} parent=5 // pred_fallthru
        _
    $region6: #{tpu_custom_call.1} parent=1 // loop_footer
      %s23 = sadd.s32 1, %s19
    $region7: #{tpu_custom_call.1} parent=1 // loop_footer_branch
      %18 = sbr.rel target = $region3
    $region8: #{tpu_custom_call.1} parent=1 // loop_exit
      _
    %666 = vsyncpa [#allocation4], 1
    %s667 = scalar_lea.sflag [#allocation4], 1
    %668 = vsyncpa %s667, 1

</llo_original>
